<compile_context>
chip_gen: v7x
topology: tpu7x:2x2x1
jax: 0.10.0
libtpu: 0.0.40
codegen_flags: <defaults>
</compile_context>

<pallas_src>
import functools

import jax
import jax.numpy as jnp
from jax import lax
from jax.experimental import pallas as pl
from jax.experimental.pallas import tpu as pltpu


def _round_up(x, m):
    return (x + m - 1) // m * m


def _pick_tm(k_pad, cout_p, m_n):
    """Pick the spatial tile width (lanes) against an ~8 MiB double-buffer budget."""
    budget = 8 * 1024 * 1024
    # per output column: (k_pad patch rows + cout_p output rows) * f32 * 2 buffers
    per_col = 2 * 4 * (k_pad + cout_p)
    tm = (budget // per_col) // 128 * 128
    tm = max(128, min(tm, 2048))
    tm = min(tm, _round_up(m_n, 128))   # never bigger than the (padded) problem
    return int(tm)


def _tgu_kernel(cout_p, xcol_ref, w_ref, b_ref, out_ref):
    """Fused dual-conv (single matmul) + per-channel bias + gated activation.

    xcol_ref : (K_pad, TM)        im2col patches, features on sublanes, spatial on lanes
    w_ref    : (2*cout_p, K_pad)  [W_conv0 ; W_gate] (row-stacked, zero-padded)
    b_ref    : (2*cout_p, 1)      [b0 + w_0 ; bg + v_0] per-channel offsets
    out_ref  : (cout_p, TM)       A * sigmoid(B), lane-dense
    """
    acc = jnp.dot(w_ref[...], xcol_ref[...], preferred_element_type=jnp.float32)
    acc = acc + b_ref[...]
    a = acc[:cout_p, :]
    g = acc[cout_p:, :]
    out_ref[...] = (a * jax.nn.sigmoid(g)).astype(out_ref.dtype)


def _im2col_transposed(x, kernel, padding, stride):
    """NCHW input -> (N, Cin*Kt*Kv, T_out*V_out) patches (features-major rows)."""
    N, Cin, T, V = x.shape
    Kt, Kv = kernel
    pt, pv = padding
    st, sv = stride
    xp = jnp.pad(x, ((0, 0), (0, 0), (pt, pt), (pv, pv)))
    T_out = (T + 2 * pt - Kt) // st + 1
    V_out = (V + 2 * pv - Kv) // sv + 1
    patches = []
    for kt in range(Kt):
        for kv in range(Kv):
            patches.append(
                xp[:, :, kt:kt + st * T_out:st, kv:kv + sv * V_out:sv]
            )  # (N, Cin, T_out, V_out)
    # stack right after Cin so the K ordering is (Cin, Kt, Kv) — matches the
    # PyTorch Conv2d weight flatten order.
    p = jnp.stack(patches, axis=2)                      # (N, Cin, Kt*Kv, T_out, V_out)
    xcol = p.reshape(N, Cin * Kt * Kv, T_out * V_out)   # (N, K, M)
    return xcol, T_out, V_out


@functools.partial(jax.jit, static_argnames=("kernel", "padding", "stride"))
def temporal_gated_unit(x, params, *, kernel, padding, stride):
    """x: (N, Cin, T, V) float32, NCHW.  Returns (N, Cout, T_out, V_out)."""
    w0, b0, w_0, wg, bg, v_0 = (
        params["conv0_w"], params["conv0_b"], params["w_0"],
        params["convg_w"], params["convg_b"], params["v_0"],
    )
    N, Cin, T, V = x.shape
    Cout = w0.shape[0]
    Kt, Kv = kernel
    K = Cin * Kt * Kv

    # --- im2col (wrapper side, transposed layout) ---------------------------
    xcol, T_out, V_out = _im2col_transposed(x, kernel, padding, stride)
    M_n = T_out * V_out

    # --- padding to TPU-friendly sizes --------------------------------------
    K_pad = _round_up(K, 8)
    Cout_p = _round_up(Cout, 8)
    TM = _pick_tm(K_pad, Cout_p, M_n)
    M_pad = _round_up(M_n, TM)

    xcol = jnp.pad(xcol, ((0, 0), (0, K_pad - K), (0, M_pad - M_n)))

    # --- fused weight / bias packing -----------------------------------------
    # (Cout, Cin, Kt, Kv) -> (Cout, K) rows; stack [conv0 ; gate] on sublanes.
    w0m = jnp.pad(w0.reshape(Cout, K), ((0, Cout_p - Cout), (0, K_pad - K)))
    wgm = jnp.pad(wg.reshape(Cout, K), ((0, Cout_p - Cout), (0, K_pad - K)))
    wf = jnp.concatenate([w0m, wgm], axis=0)                     # (2*Cout_p, K_pad)

    b0f = jnp.pad(b0 + w_0.reshape(-1), (0, Cout_p - Cout))
    bgf = jnp.pad(bg + v_0.reshape(-1), (0, Cout_p - Cout))
    bf = jnp.concatenate([b0f, bgf], axis=0).reshape(2 * Cout_p, 1)

    # --- tiled, pipelined pallas call ----------------------------------------
    grid = (N, M_pad // TM)
    out_pad = pl.pallas_call(
        functools.partial(_tgu_kernel, Cout_p),
        out_shape=jax.ShapeDtypeStruct((N, Cout_p, M_pad), jnp.float32),
        grid=grid,
        in_specs=[
            # activation tile: new block every grid step (double-buffered DMA)
            pl.BlockSpec((None, K_pad, TM), lambda n, m: (n, 0, m)),
            # weights / biases: constant block index -> VMEM-resident
            pl.BlockSpec((2 * Cout_p, K_pad), lambda n, m: (0, 0)),
            pl.BlockSpec((2 * Cout_p, 1), lambda n, m: (0, 0)),
        ],
        out_specs=pl.BlockSpec((None, Cout_p, TM), lambda n, m: (n, 0, m)),
        compiler_params=pltpu.CompilerParams(
            dimension_semantics=("parallel", "parallel"),
            vmem_limit_bytes=32 * 1024 * 1024,
        ),
    )(xcol, wf, bf)

    # Drop channel / spatial padding; the reshape to NCHW is free (no transpose).
    out = out_pad[:, :Cout, :M_n].reshape(N, Cout, T_out, V_out)
    return out


def _reference(x, params, kernel, padding, stride):
    """Pure-JAX reference matching the PyTorch forward exactly."""
    pt, pv = padding
    dn = ("NCHW", "OIHW", "NCHW")
    A = lax.conv_general_dilated(x, params["conv0_w"], window_strides=stride,
                                 padding=[(pt, pt), (pv, pv)], dimension_numbers=dn)
    A = A + params["conv0_b"][None, :, None, None] + params["w_0"]
    B = lax.conv_general_dilated(x, params["convg_w"], window_strides=stride,
                                 padding=[(pt, pt), (pv, pv)], dimension_numbers=dn)
    B = B + params["convg_b"][None, :, None, None] + params["v_0"]
    return A * jax.nn.sigmoid(B)


if __name__ == "__main__":
    # Small shapes consistent with the module: N=2, Cin=4, Cout=8, T=16, V=16,
    # temporal conv kernel (3, 1), padding (1, 0), stride (1, 1).
    N, Cin, Cout, T, V = 2, 4, 8, 16, 16
    kernel, padding, stride = (3, 1), (1, 0), (1, 1)

    key = jax.random.PRNGKey(0)
    kx, kw0, kb0, kp0, kwg, kbg, kpg = jax.random.split(key, 7)

    x = jax.random.normal(kx, (N, Cin, T, V), dtype=jnp.float32)
    params = {
        "conv0_w": jax.random.normal(kw0, (Cout, Cin, *kernel), dtype=jnp.float32) * 0.1,
        "conv0_b": jax.random.normal(kb0, (Cout,), dtype=jnp.float32) * 0.1,
        "w_0":     jax.random.normal(kp0, (1, Cout, 1, 1), dtype=jnp.float32),
        "convg_w": jax.random.normal(kwg, (Cout, Cin, *kernel), dtype=jnp.float32) * 0.1,
        "convg_b": jax.random.normal(kbg, (Cout,), dtype=jnp.float32) * 0.1,
        "v_0":     jax.random.normal(kpg, (1, Cout, 1, 1), dtype=jnp.float32),
    }

    out = temporal_gated_unit(x, params, kernel=kernel, padding=padding, stride=stride)
    out = jax.block_until_ready(out)

    ref = _reference(x, params, kernel, padding, stride)
    assert out.shape == ref.shape == (N, Cout, T, V), (out.shape, ref.shape)
    assert jnp.allclose(out, ref, atol=1e-4, rtol=1e-4), "mismatch vs reference"

    print("KERNEL_OK")
</pallas_src>

<mosaic_0001>
module attributes {stable_mosaic.version = 11 : i64} {
  func.func @_tgu_kernel(%arg0: i32, %arg1: i32, %arg2: memref<1x16x256xf32, #tpu.memory_space<vmem>>, %arg3: memref<16x16xf32, #tpu.memory_space<vmem>>, %arg4: memref<16x1xf32, #tpu.memory_space<vmem>>, %arg5: memref<1x8x256xf32, #tpu.memory_space<vmem>>) attributes {dimension_semantics = [#tpu.dimension_semantics<parallel>, #tpu.dimension_semantics<parallel>], iteration_bounds = array<i64: 2, 1>, scalar_prefetch = 0 : i64, scratch_operands = 0 : i64, tpu.core_type = #tpu.core_type<tc>, window_params = [{transform_indices = @transform_0, window_bounds = array<i64: 1, 16, 256>}, {pipeline_mode = #tpu.pipeline_mode<synchronous>, transform_indices = @transform_1, window_bounds = array<i64: 16, 16>}, {pipeline_mode = #tpu.pipeline_mode<synchronous>, transform_indices = @transform_2, window_bounds = array<i64: 16, 1>}, {transform_indices = @transform_3, window_bounds = array<i64: 1, 8, 256>}]} {
    %c0 = arith.constant 0 : index
    %c0_0 = arith.constant 0 : index
    %0 = vector.load %arg3[%c0, %c0_0] : memref<16x16xf32, #tpu.memory_space<vmem>>, vector<16x16xf32>
    %c0_1 = arith.constant 0 : index
    %c0_2 = arith.constant 0 : index
    %c0_3 = arith.constant 0 : index
    %1 = vector.load %arg2[%c0_1, %c0_2, %c0_3] : memref<1x16x256xf32, #tpu.memory_space<vmem>>, vector<1x16x256xf32>
    %2 = vector.shape_cast %1 : vector<1x16x256xf32> to vector<16x256xf32>
    %cst = arith.constant dense<0.000000e+00> : vector<16x256xf32>
    %3 = tpu.matmul %0, %2, %cst {dimension_numbers = #tpu.dot_dimension_numbers<[1], [0], [0], [1], [0, 0, 1, 1], [], []>} : vector<16x16xf32>, vector<16x256xf32>, vector<16x256xf32> -> vector<16x256xf32>
    %c0_4 = arith.constant 0 : index
    %c0_5 = arith.constant 0 : index
    %4 = vector.load %arg4[%c0_4, %c0_5] : memref<16x1xf32, #tpu.memory_space<vmem>>, vector<16x1xf32>
    %5 = vector.broadcast %4 : vector<16x1xf32> to vector<16x256xf32>
    %6 = arith.addf %3, %5 : vector<16x256xf32>
    %7 = vector.extract_strided_slice %6 {offsets = [0, 0], sizes = [8, 256], strides = [1, 1]} : vector<16x256xf32> to vector<8x256xf32>
    %8 = vector.extract_strided_slice %6 {offsets = [8, 0], sizes = [8, 256], strides = [1, 1]} : vector<16x256xf32> to vector<8x256xf32>
    %9 = arith.negf %8 : vector<8x256xf32>
    %10 = math.exp %9 : vector<8x256xf32>
    %cst_6 = arith.constant 1.000000e+00 : f32
    %11 = vector.broadcast %cst_6 : f32 to vector<8x256xf32>
    %12 = arith.addf %11, %10 : vector<8x256xf32>
    %13 = arith.divf %11, %12 : vector<8x256xf32>
    %14 = arith.mulf %7, %13 : vector<8x256xf32>
    %c0_7 = arith.constant 0 : index
    %c0_8 = arith.constant 0 : index
    %c0_9 = arith.constant 0 : index
    %15 = vector.load %arg5[%c0_7, %c0_8, %c0_9] : memref<1x8x256xf32, #tpu.memory_space<vmem>>, vector<1x8x256xf32>
    %16 = vector.shape_cast %15 : vector<1x8x256xf32> to vector<8x256xf32>
    %17 = vector.shape_cast %14 : vector<8x256xf32> to vector<1x8x256xf32>
    tpu.vector_store %arg5[%c0_7, %c0_8, %c0_9], %17 {strides = array<i32>} : memref<1x8x256xf32, #tpu.memory_space<vmem>>, vector<1x8x256xf32>,
    return
  }
  func.func @transform_0(%arg0: i32, %arg1: i32) -> (i32, i32, i32) {
    %c0_i32 = arith.constant 0 : i32
    %c0_i32_0 = arith.constant 0 : i32
    return %arg0, %c0_i32, %arg1 : i32, i32, i32
  }
  func.func @transform_1(%arg0: i32, %arg1: i32) -> (i32, i32) {
    %c0_i32 = arith.constant 0 : i32
    %c0_i32_0 = arith.constant 0 : i32
    %c0_i32_1 = arith.constant 0 : i32
    return %c0_i32, %c0_i32_0 : i32, i32
  }
  func.func @transform_2(%arg0: i32, %arg1: i32) -> (i32, i32) {
    %c0_i32 = arith.constant 0 : i32
    %c0_i32_0 = arith.constant 0 : i32
    %c0_i32_1 = arith.constant 0 : i32
    return %c0_i32, %c0_i32_0 : i32, i32
  }
  func.func @transform_3(%arg0: i32, %arg1: i32) -> (i32, i32, i32) {
    %c0_i32 = arith.constant 0 : i32
    %c0_i32_0 = arith.constant 0 : i32
    return %arg0, %c0_i32, %arg1 : i32, i32, i32
  }
}

</mosaic_0001>

<llo_original>
// kernel: temporal_gated_unit.1
$region0: #{temporal_gated_unit.1}
  #allocation0 [shape = 'u32[]', space=smem, size = 0x4, offset = 0x4, fixed_abs, tag = 'smem constant byte address 0x4 - core index']
  #allocation1 [shape = 'u32[144,128]{1,0:T(1,128)}', space=vmem, size = 0x12000, scoped, tag = 'internal scratch']
  %s0 = inlined_call_operand.vmem [shape: f32[2,16,256], index: 0, kind: input, shape index: {}]
  %s1 = inlined_call_operand.vmem [shape: f32[16,16], index: 1, kind: input, shape index: {}]
  %s2 = inlined_call_operand.vmem [shape: f32[16,1], index: 2, kind: input, shape index: {}]
  %s3 = inlined_call_operand.vmem [shape: f32[2,8,256], index: 3, kind: output, shape index: {}]
  %s4 = sld [smem:[#allocation0]]
  $region45: #{temporal_gated_unit.1} parent=0
    _
  %s6 = ssub.s32 1, %s4
  %s7 = scalar_select 0, %s6, %s4
  loop: start=0, step=1, limit=4
  $region2: #{temporal_gated_unit.1} parent=0 // loop_pre_header
    _
  $region3: #{temporal_gated_unit.1} parent=0 // loop_header
    %s9 = sphi 0, %s13
    %p10 = scmp.ge.s32.totalorder %s9, 4
    %s16 = sphi 0, %s28
    %s17 = sphi 0, %s24
    %s18 = sphi 0, %s16
    %s19 = sphi 0, %s17
    %s20 = sphi 0, %s18
    %s21 = sphi 0, %s19
    %s33 = sphi 0, %s35
    %s36 = sphi 0, %s33
    %s37 = sphi 0, %s36
    %s53 = sphi 0, %s37
    %s57 = sphi 0, %s57
    %s59 = sphi 0, %s57
    %s60 = sphi 0, %s59
    %s74 = sphi 0, %s60
    %s78 = sphi 0, %s78
    %s80 = sphi 0, %s78
    %s81 = sphi 0, %s80
    %s95 = sphi 0, %s81
    %s103 = sphi 0, %s105
    %s106 = sphi 0, %s103
    %s107 = sphi 0, %s106
    %s123 = sphi 0, %s107
  $region4: #{temporal_gated_unit.1} parent=0 // loop_header_branch
    %12 = sbr.rel (%p10) target = $region8
  $region5: #{temporal_gated_unit.1} parent=0 // loop_body
    %s14 = ssub.s32 %s9, 1
    %s15 = ssub.s32 %s9, 2
    %s22 = sadd.s32 1, %s17
    %p23 = scmp.ge.s32.totalorder %s22, 1
    %s24 = scalar_select %p23, 0, %s22
    %s25 = sadd.s32 1, %s16
    %s26 = scalar_select %p23, %s25, %s16
    %p27 = scmp.ge.s32.totalorder %s26, 2
    %s28 = scalar_select %p27, 0, %s26
    %s29 = ssub.s32 %s16, %s28
    %s30 = ssub.s32 %s17, %s24
    %s31 = sor.u32 %s29, %s30
    %p32 = scmp.eq.s32.totalorder %s31, 0
    %s34 = sadd.s32 %s33, 1
    %s35 = scalar_select %p32, %s33, %s34
    %p38 = pneg %p32
    %p39 = scmp.eq.s32.totalorder %s9, 1
    %p40 = por %p38, %p39
    %p41 = scmp.ne.s32.totalorder %s33, %s36
    %p42 = scmp.eq.s32.totalorder %s9, 0
    %p43 = por %p41, %p42
    %p44 = scmp.ne.s32.totalorder %s33, %s36
    %p45 = scmp.eq.s32.totalorder %s14, 1
    %p46 = por %p44, %p45
    %p47 = scmp.ne.s32.totalorder %s36, %s37
    %p48 = scmp.eq.s32.totalorder %s14, 0
    %p49 = por %p47, %p48
    %p50 = scmp.ne.s32.totalorder %s36, %s37
    %p51 = scmp.eq.s32.totalorder %s15, 1
    %p52 = por %p50, %p51
    %p54 = scmp.ne.s32.totalorder %s37, %s53
    %p55 = scmp.eq.s32.totalorder %s15, 0
    %p56 = por %p54, %p55
    %s58 = sadd.s32 %s57, 1
    %p61 = scmp.eq.s32.totalorder %s9, 1
    %p62 = scmp.ne.s32.totalorder %s57, %s59
    %p63 = scmp.eq.s32.totalorder %s9, 0
    %p64 = por %p62, %p63
    %p65 = scmp.ne.s32.totalorder %s57, %s59
    %p66 = scmp.eq.s32.totalorder %s14, 1
    %p67 = por %p65, %p66
    %p68 = scmp.ne.s32.totalorder %s59, %s60
    %p69 = scmp.eq.s32.totalorder %s14, 0
    %p70 = por %p68, %p69
    %p71 = scmp.ne.s32.totalorder %s59, %s60
    %p72 = scmp.eq.s32.totalorder %s15, 1
    %p73 = por %p71, %p72
    %p75 = scmp.ne.s32.totalorder %s60, %s74
    %p76 = scmp.eq.s32.totalorder %s15, 0
    %p77 = por %p75, %p76
    %s79 = sadd.s32 %s78, 1
    %p82 = scmp.eq.s32.totalorder %s9, 1
    %p83 = scmp.ne.s32.totalorder %s78, %s80
    %p84 = scmp.eq.s32.totalorder %s9, 0
    %p85 = por %p83, %p84
    %p86 = scmp.ne.s32.totalorder %s78, %s80
    %p87 = scmp.eq.s32.totalorder %s14, 1
    %p88 = por %p86, %p87
    %p89 = scmp.ne.s32.totalorder %s80, %s81
    %p90 = scmp.eq.s32.totalorder %s14, 0
    %p91 = por %p89, %p90
    %p92 = scmp.ne.s32.totalorder %s80, %s81
    %p93 = scmp.eq.s32.totalorder %s15, 1
    %p94 = por %p92, %p93
    %p96 = scmp.ne.s32.totalorder %s81, %s95
    %p97 = scmp.eq.s32.totalorder %s15, 0
    %p98 = por %p96, %p97
    %s99 = ssub.s32 %s16, %s28
    %s100 = ssub.s32 %s17, %s24
    %s101 = sor.u32 %s99, %s100
    %p102 = scmp.eq.s32.totalorder %s101, 0
    %s104 = sadd.s32 %s103, 1
    %s105 = scalar_select %p102, %s103, %s104
    %p108 = pneg %p102
    %p109 = scmp.eq.s32.totalorder %s9, 1
    %p110 = por %p108, %p109
    %p111 = scmp.ne.s32.totalorder %s103, %s106
    %p112 = scmp.eq.s32.totalorder %s9, 0
    %p113 = por %p111, %p112
    %p114 = scmp.ne.s32.totalorder %s103, %s106
    %p115 = scmp.eq.s32.totalorder %s14, 1
    %p116 = por %p114, %p115
    %p117 = scmp.ne.s32.totalorder %s106, %s107
    %p118 = scmp.eq.s32.totalorder %s14, 0
    %p119 = por %p117, %p118
    %p120 = scmp.ne.s32.totalorder %s106, %s107
    %p121 = scmp.eq.s32.totalorder %s15, 1
    %p122 = por %p120, %p121
    %p124 = scmp.ne.s32.totalorder %s107, %s123
    %p125 = scmp.eq.s32.totalorder %s15, 0
    %p126 = por %p124, %p125
    %p127 = scmp.le.s32.totalorder 1, %s9
    %p128 = scmp.lt.s32.totalorder %s9, 3
    %p129 = pnand %p127, %p128
    %p130 = pneg %p129
    // Predicated region
    $region9: #{temporal_gated_unit.1} parent=5 // pred_check
      _
    $region10: #{temporal_gated_unit.1} parent=5 // pred_check_branch
      %132 = sbr.rel (%p129) target = $region12
    $region11: #{temporal_gated_unit.1} parent=5 // pred_region
      %s133 = ssub.s32 %s9, 1
      // Predicated region
      $region13: #{temporal_gated_unit.1} parent=11 // pred_check
        %p134 = pneg %p70
      $region14: #{temporal_gated_unit.1} parent=11 // pred_check_branch
        %136 = sbr.rel (%p134) target = $region16
      $region15: #{temporal_gated_unit.1} parent=11 // pred_region
        _
      $region16: #{temporal_gated_unit.1} parent=11 // pred_fallthru
        _
      // Predicated region
      $region17: #{temporal_gated_unit.1} parent=11 // pred_check
        %p137 = pneg %p91
      $region18: #{temporal_gated_unit.1} parent=11 // pred_check_branch
        %139 = sbr.rel (%p137) target = $region20
      $region19: #{temporal_gated_unit.1} parent=11 // pred_region
        _
      $region20: #{temporal_gated_unit.1} parent=11 // pred_fallthru
        _
    $region12: #{temporal_gated_unit.1} parent=5 // pred_fallthru
      _
    %p140 = scmp.lt.s32.totalorder %s9, 2
    // Predicated region
    $region21: #{temporal_gated_unit.1} parent=5 // pred_check
      %p141 = pneg %p140
    $region22: #{temporal_gated_unit.1} parent=5 // pred_check_branch
      %143 = sbr.rel (%p141) target = $region24
    $region23: #{temporal_gated_unit.1} parent=5 // pred_region
      // Predicated region
      $region25: #{temporal_gated_unit.1} parent=23 // pred_check
        %p144 = pneg %p43
      $region26: #{temporal_gated_unit.1} parent=23 // pred_check_branch
        %146 = sbr.rel (%p144) target = $region28
      $region27: #{temporal_gated_unit.1} parent=23 // pred_region
        %s147 = smul.u32 2, %s17
        %p148 = scmp.lt.s32.totalorder %s16, 1
        %s149 = scalar_select %p148, %s16, 1
        %p150 = scmp.lt.s32.totalorder %s147, 1
        %s151 = scalar_select %p150, %s147, 1
        %s152 = smul.addr %s149, 4
        %s153 = sadd.s32 %s151, %s152
        %s154 = smul.addr %s153, 8
        %s155 = scalar_lea.vmem %s0, %s154
        %s156 = smul.u32 2, %s17
      $region28: #{temporal_gated_unit.1} parent=23 // pred_fallthru
        _
    $region24: #{temporal_gated_unit.1} parent=5 // pred_fallthru
      _
    %p157 = scmp.le.s32.totalorder 1, %s9
    %p158 = scmp.lt.s32.totalorder %s9, 3
    %p159 = pnand %p157, %p158
    %p160 = pneg %p159
    // Predicated region
    $region29: #{temporal_gated_unit.1} parent=5 // pred_check
      _
    $region30: #{temporal_gated_unit.1} parent=5 // pred_check_branch
      %162 = sbr.rel (%p159) target = $region32
    $region31: #{temporal_gated_unit.1} parent=5 // pred_region
      %s163 = ssub.s32 %s9, 1
      %s164 = smul.u32 2, %s19
      %p165 = scmp.lt.s32.totalorder %s18, 1
      %s166 = scalar_select %p165, %s18, 1
      %p167 = scmp.lt.s32.totalorder %s164, 1
      %s168 = scalar_select %p167, %s164, 1
      %s169 = smul.addr %s166, 4
      %s170 = sadd.s32 %s168, %s169
      %s171 = smul.addr %s170, 8
      %s172 = scalar_lea.vmem %s0, %s171
      %p173 = pneg %p49
      %p174 = pneg %p46
      %p175 = pneg %p70
      %p176 = pneg %p67
      %p177 = pneg %p91
      %p178 = pneg %p88
      %p179 = pneg %p119
      %p180 = pneg %p116
      %s181 = smul.u32 2, %s19
      %p182 = scmp.lt.s32.totalorder %s18, 1
      %s183 = scalar_select %p182, %s18, 1
      %p184 = scmp.lt.s32.totalorder %s181, 1
      %s185 = scalar_select %p184, %s181, 1
      %s186 = smul.addr %s183, 2
      %s187 = sadd.s32 %s185, %s186
      %s188 = smul.addr %s187, 8
      %s189 = scalar_lea.vmem %s3, %s188
      %s190 = smul.u32 2, %s19
      %p191 = scmp.lt.s32.totalorder %s18, 1
      %s192 = scalar_select %p191, %s18, 1
      %p193 = scmp.lt.s32.totalorder %s190, 1
      %s194 = scalar_select %p193, %s190, 1
      %s195 = smul.addr %s192, 4
      %s196 = sadd.s32 %s194, %s195
      %s197 = smul.addr %s196, 8
      %s198 = scalar_lea.vmem %s0, %s197
      %s199 = smul.u32 2, %s19
      %s200 = smul.u32 2, %s19
      %p201 = scmp.lt.s32.totalorder %s18, 1
      %s202 = scalar_select %p201, %s18, 1
      %p203 = scmp.lt.s32.totalorder %s200, 1
      %s204 = scalar_select %p203, %s200, 1
      %s205 = smul.addr %s202, 2
      %s206 = sadd.s32 %s204, %s205
      %s207 = smul.addr %s206, 8
      %s208 = scalar_lea.vmem %s3, %s207
      %s209 = smul.u32 2, %s19
      %v210 = vld [vmem:[%s1] sm:$0xff]
      %v211 = vld [vmem:[%s1 + $0x8] sm:$0xff]
      %v212 = vld [vmem:[%s198] sm:$0xff]
      %v213 = vld [vmem:[%s198 + $0x8] sm:$0xff]
      %v214 = vld [vmem:[%s198 + $0x10] sm:$0xff]
      %v215 = vld [vmem:[%s198 + $0x18] sm:$0xff]
      %v216 = vld [vmem:[%s2] sm:$0xff]
      %v217 = vld [vmem:[%s2 + $0x8] sm:$0xff]
      %219 = vset.pattern.permute.xlu0 0
      %220 = vperm.xlu0 %219, %v216
      %v221 = vpop.permute.xlu0 %220
      %224 = vset.pattern.permute.xlu0 0
      %225 = vperm.xlu0 %224, %v217
      %v226 = vpop.permute.xlu0 %225
      %vm228 = vcmask 130048
      %v230 = vsel %vm228, %v210, 0
      %v233 = vsel %vm228, %v211, 0
      %235 = vmatprep.subr.mxu0 %v213
      %236 = vmatpush1.msra.mxu0 %v212
      %237 = vmatprep.subr.mxu0 %v215
      %238 = vmatpush1.msra.mxu0 %v214
      %239 = vmatprep.subr.mxu0 0.0
      %240 = vmatpush1.msra.mxu0 0.0
      %241 = vmatprep.subr.mxu0 0.0
      %242 = vmatpush1.msra.mxu0 0.0
      %243 = vmatprep.subr.mxu0 0.0
      %244 = vmatpush1.msra.mxu0 0.0
      %245 = vmatprep.subr.mxu0 0.0
      %246 = vmatpush1.msra.mxu0 0.0
      %247 = vmatprep.subr.mxu0 0.0
      %248 = vmatpush1.msra.mxu0 0.0
      %249 = vmatprep.subr.mxu0 0.0
      %250 = vmatpush1.msra.mxu0 0.0
      %251 = vmatprep.subr.mxu0 0.0
      %252 = vmatpush1.msra.mxu0 0.0
      %253 = vmatprep.subr.mxu0 0.0
      %254 = vmatpush1.msra.mxu0 0.0
      %255 = vmatprep.subr.mxu0 0.0
      %256 = vmatpush1.msra.mxu0 0.0
      %257 = vmatprep.subr.mxu0 0.0
      %258 = vmatpush1.msra.mxu0 0.0
      %259 = vmatprep.subr.mxu0 0.0
      %260 = vmatpush1.msra.mxu0 0.0
      %261 = vmatprep.subr.mxu0 0.0
      %262 = vmatpush1.msra.mxu0 0.0
      %263 = vmatprep.subr.mxu0 0.0
      %264 = vmatpush1.msra.mxu0 0.0
      %265 = vmatprep.subr.mxu0 0.0
      %266 = vmatpush1.msra.mxu0 0.0
      %267 = vmatprep.subr.mxu0 0.0
      %268 = vmatpush1.msra.mxu0 0.0
      %269 = vmatprep.subr.mxu0 0.0
      %270 = vmatpush1.msra.mxu0 0.0
      %271 = vmatprep.subr.mxu0 0.0
      %272 = vmatpush1.msra.mxu0 0.0
      %273 = vmatprep.subr.mxu0 0.0
      %274 = vmatpush1.msra.mxu0 0.0
      %275 = vmatprep.subr.mxu0 0.0
      %276 = vmatpush1.msra.mxu0 0.0
      %277 = vmatprep.subr.mxu0 0.0
      %278 = vmatpush1.msra.mxu0 0.0
      %279 = vmatprep.subr.mxu0 0.0
      %280 = vmatpush1.msra.mxu0 0.0
      %281 = vmatprep.subr.mxu0 0.0
      %282 = vmatpush1.msra.mxu0 0.0
      %283 = vmatprep.subr.mxu0 0.0
      %284 = vmatpush1.msra.mxu0 0.0
      %285 = vmatprep.subr.mxu0 0.0
      %286 = vmatpush1.msra.mxu0 0.0
      %287 = vmatprep.subr.mxu0 0.0
      %288 = vmatpush1.msra.mxu0 0.0
      %289 = vmatprep.subr.mxu0 0.0
      %290 = vmatpush1.msra.mxu0 0.0
      %291 = vmatprep.subr.mxu0 0.0
      %292 = vmatpush1.msra.mxu0 0.0
      %293 = vmatprep.subr.mxu0 0.0
      %294 = vmatpush1.msra.mxu0 0.0
      %295 = vmatprep.subr.mxu0 0.0
      %296 = vmatpush1.msra.mxu0 0.0
      %297 = vmatprep.subr.mxu0 0.0
      %298 = vmatpush1.msra.mxu0 0.0
      %299 = vmatprep.mubr.f32.mxu0 0.0
      %300 = vmatmul.mubr.f32.gmra.mrb[0].mxu0 %v230
      %v301 = vpop.f32.mrb[0].mxu0
      %v302 = vadd.f32 %v221, %v301
      %v303 = vpop.f32.mrb[0].mxu0
      %v304 = vadd.f32 %v221, %v303
      %305 = vmatprep.mubr.f32.mxu0 0.0
      %306 = vmatmul.mubr.f32.gmra.mrb[0].mxu0 %v233
      %v307 = vpop.f32.mrb[0].mxu0
      %v308 = vadd.f32 %v226, %v307
      %v309 = vpop.f32.mrb[0].mxu0
      %v310 = vadd.f32 %v226, %v309
      %311 = vdwg.mxu0
      %v312 = vxor.u32 %v308, 2147483648
      %v313 = vxor.u32 %v310, 2147483648
      %v314 = vmul.f32 %v312, 1.442695
      %v315 = vpow.pop %v314
      %v316 = vmul.f32 %v313, 1.442695
      %v317 = vpow.pop %v316
      %v318 = vadd.f32 %v315, 1.0
      %v319 = vadd.f32 %v317, 1.0
      %v320 = vrcp.pop %v318
      %v321 = vmul.f32 1.0, %v320
      %v322 = vrcp.pop %v319
      %v323 = vmul.f32 1.0, %v322
      %v324 = vmul.f32 %v302, %v321
      %v325 = vmul.f32 %v304, %v323
      %326 = vst [vmem:[%s208] sm:$0xff] %v324
      %327 = vst [vmem:[%s208 + $0x8] sm:$0xff] %v325
      %s328 = smul.u32 2, %s19
      %p329 = scmp.lt.s32.totalorder %s18, 1
      %s330 = scalar_select %p329, %s18, 1
      %p331 = scmp.lt.s32.totalorder %s328, 1
      %s332 = scalar_select %p331, %s328, 1
      %s333 = smul.addr %s330, 2
      %s334 = sadd.s32 %s332, %s333
      %s335 = smul.addr %s334, 8
      %s336 = scalar_lea.vmem %s3, %s335
      // Predicated region
      $region33: #{temporal_gated_unit.1} parent=31 // pred_check
        %p337 = pneg %p116
      $region34: #{temporal_gated_unit.1} parent=31 // pred_check_branch
        %339 = sbr.rel (%p337) target = $region36
      $region35: #{temporal_gated_unit.1} parent=31 // pred_region
        %s340 = smul.u32 2, %s19
      $region36: #{temporal_gated_unit.1} parent=31 // pred_fallthru
        _
    $region32: #{temporal_gated_unit.1} parent=5 // pred_fallthru
      _
    %p341 = scmp.le.s32.totalorder 2, %s9
    // Predicated region
    $region37: #{temporal_gated_unit.1} parent=5 // pred_check
      %p342 = pneg %p341
    $region38: #{temporal_gated_unit.1} parent=5 // pred_check_branch
      %344 = sbr.rel (%p342) target = $region40
    $region39: #{temporal_gated_unit.1} parent=5 // pred_region
      %s345 = ssub.s32 %s9, 2
      // Predicated region
      $region41: #{temporal_gated_unit.1} parent=39 // pred_check
        %p346 = pneg %p122
      $region42: #{temporal_gated_unit.1} parent=39 // pred_check_branch
        %348 = sbr.rel (%p346) target = $region44
      $region43: #{temporal_gated_unit.1} parent=39 // pred_region
        %s349 = smul.u32 2, %s21
        %p350 = scmp.lt.s32.totalorder %s20, 1
        %s351 = scalar_select %p350, %s20, 1
        %p352 = scmp.lt.s32.totalorder %s349, 1
        %s353 = scalar_select %p352, %s349, 1
        %s354 = smul.addr %s351, 2
        %s355 = sadd.s32 %s353, %s354
        %s356 = smul.addr %s355, 8
        %s357 = scalar_lea.vmem %s3, %s356
      $region44: #{temporal_gated_unit.1} parent=39 // pred_fallthru
        _
    $region40: #{temporal_gated_unit.1} parent=5 // pred_fallthru
      _
  $region6: #{temporal_gated_unit.1} parent=0 // loop_footer
    %s13 = sadd.s32 1, %s9
  $region7: #{temporal_gated_unit.1} parent=0 // loop_footer_branch
    %8 = sbr.rel target = $region3
  $region8: #{temporal_gated_unit.1} parent=0 // loop_exit
    _

</llo_original>
